<compile_context>
chip_gen: v7x
topology: tpu7x:2x2x1
jax: 0.10.0
libtpu: 0.0.40
codegen_flags: <defaults>
</compile_context>

<pallas_src>
import functools

import jax
import jax.numpy as jnp
from jax import lax
from jax.experimental import pallas as pl
from jax.experimental.pallas import tpu as pltpu


def _round_up(a: int, b: int) -> int:
    return (a + b - 1) // b * b


def _device_kind() -> str:
    try:
        return jax.devices()[0].device_kind.lower()
    except Exception:
        return ""


def ffn_kernel(seed_ref, x_ref, w1_ref, b1_ref, w2_ref, b2_ref, o_ref, *scratch,
               p_dropout: float, training: bool, tm: int):
    k = pl.program_id(1)
    k_last = pl.num_programs(1) - 1
    use_dropout = training and p_dropout > 0.0
    # Interpret-safe: program_id only at the kernel top level (never inside
    # a pl.when body).
    row0 = pl.program_id(0) * tm

    if use_dropout:
        mask_ref = scratch[0]
        thresh = min(int(round(p_dropout * (1 << 31))), (1 << 31) - 1)

        # Hoisted to k==0 so the VPU hash work overlaps the MXU-bound middle
        # K steps instead of extending the final step.
        # TODO(synk): bit stream differs from torch.nn.Dropout's RNG;
        # semantics (keep-prob 1-p, scaled by 1/(1-p)) are identical.
        @pl.when(k == 0)
        def _make_mask():
            shape = mask_ref.shape
            r = (lax.broadcasted_iota(jnp.int32, shape, 0) + row0).astype(jnp.uint32)
            c = lax.broadcasted_iota(jnp.int32, shape, 1).astype(jnp.uint32)
            s = seed_ref[0].astype(jnp.uint32)
            hb = (r * jnp.uint32(0x9E3779B1)
                  + c * jnp.uint32(0x85EBCA77)
                  + s * jnp.uint32(0xC2B2AE3D))
            hb = hb ^ (hb >> 16)
            hb = hb * jnp.uint32(0x85EBCA6B)
            hb = hb ^ (hb >> 13)
            hb = hb * jnp.uint32(0xC2B2AE35)
            hb = hb ^ (hb >> 16)
            u31 = (hb >> 1).astype(jnp.int32)            # uniform in [0, 2^31)
            mask_ref[...] = (u31 >= jnp.int32(thresh)).astype(jnp.int8)

    # ---- fc1 K-tile: relu(x @ W1[:, ktile] + b1[ktile]) ----
    # x / W1 already bf16 (cast once in the wrapper); f32 MXU accumulation.
    h = jnp.dot(x_ref[...], w1_ref[...], preferred_element_type=jnp.float32)
    h = jnp.maximum(h + b1_ref[...], 0.0)

    # ---- fc2 partial product, accumulated into the resident f32 out block ----
    part = jnp.dot(h.astype(jnp.bfloat16), w2_ref[...],
                   preferred_element_type=jnp.float32)

    @pl.when(k == 0)
    def _first():
        o_ref[...] = part            # direct store: no zero-init pass

    @pl.when(k > 0)
    def _accum():
        o_ref[...] += part

    @pl.when(k == k_last)
    def _finish():
        y = o_ref[...] + b2_ref[...]
        if use_dropout:
            keep = scratch[0][...] != 0
            y = jnp.where(keep, y * jnp.float32(1.0 / (1.0 - p_dropout)),
                          jnp.float32(0.0))
        o_ref[...] = y


def pad_ffn_params(w1, b1, w2, b2):
    """One-time lane-dense (128) padding + bf16 cast of the weights.

    Call once and reuse across forward calls so the per-call wrapper does no
    weight traffic.  w1: [n_state, n_hidden], w2: [n_hidden, n_state].
    """
    n_state, n_hidden = w1.shape
    assert w2.shape == (n_hidden, n_state)
    n_state_p = _round_up(n_state, 128)
    n_hidden_p = _round_up(n_hidden, 128)
    w1_p = jnp.zeros((n_state_p, n_hidden_p), jnp.bfloat16).at[
        :n_state, :n_hidden].set(w1.astype(jnp.bfloat16))
    w2_p = jnp.zeros((n_hidden_p, n_state_p), jnp.bfloat16).at[
        :n_hidden, :n_state].set(w2.astype(jnp.bfloat16))
    b1_p = jnp.zeros((1, n_hidden_p), jnp.float32).at[0, :n_hidden].set(
        b1.astype(jnp.float32))
    b2_p = jnp.zeros((1, n_state_p), jnp.float32).at[0, :n_state].set(
        b2.astype(jnp.float32))
    return dict(w1=w1_p, b1=b1_p, w2=w2_p, b2=b2_p,
                n_state=n_state, n_hidden=n_hidden)


def positionwise_feed_forward(x, params, *, p_dropout=0.5, training=False,
                              seed=0, tm=None, tk=512):
    """x: [T, n_state]; params: output of pad_ffn_params."""
    T, n_state = x.shape
    assert n_state == params["n_state"]
    n_state_p, n_hidden_p = params["w1"].shape
    use_dropout = bool(training) and float(p_dropout) > 0.0

    # Per-generation tile / VMEM defaults.
    gen = _device_kind()
    if "v7" in gen:
        vmem_cap = 48 << 20          # leave headroom inside 64 MiB physical
        tm_default = 768
    elif "v6" in gen:
        vmem_cap = 100 << 20
        tm_default = 1024
    elif "v5" in gen:
        vmem_cap = 100 << 20
        tm_default = 512             # v5e is already MXU-bound at 512
    else:
        vmem_cap = 64 << 20
        tm_default = 512
    if tm is None:
        tm = tm_default

    # K-tile: full hidden residency if the bf16 weights are small enough
    # (weights then DMA once per call), else the largest 128-multiple <= tk
    # that divides n_hidden_p (no wasted zero-padded K tiles).
    full_w_bytes = 2 * n_state_p * n_hidden_p * 2          # W1 + W2, bf16
    if 2 * full_w_bytes <= vmem_cap // 3:                   # double-buffered
        tk_eff = n_hidden_p
    else:
        tk_cap = min(_round_up(tk, 128), n_hidden_p)
        tk_eff = 128
        for cand in range(tk_cap, 127, -128):
            if n_hidden_p % cand == 0:
                tk_eff = cand
                break

    # Row tile sizing.
    t_rows = _round_up(T, 128)
    tm_eff = min(_round_up(tm, 128), t_rows)
    if "v7" in gen and t_rows > 128 and t_rows <= tm_eff:
        # >=2 row tiles so both v7x TensorCores get work on the parallel axis.
        tm_eff = (t_rows // 128 + 1) // 2 * 128

    def vmem_need(tm_e, tk_e):
        return (2 * tm_e * n_state_p * 2        # x row tiles (bf16, 2 bufs)
                + 2 * tm_e * n_state_p * 4      # out row tiles (f32, 2 bufs)
                + 2 * n_state_p * tk_e * 2      # W1 K-tiles (bf16, 2 bufs)
                + 2 * tk_e * n_state_p * 2      # W2 K-tiles (bf16, 2 bufs)
                + 2 * (tk_e + n_state_p) * 4    # biases (f32)
                + tm_e * tk_e * 6               # fc1 intermediate f32 + bf16
                + (tm_e * n_state_p if use_dropout else 0))   # int8 mask

    while tm_eff > 128 and vmem_need(tm_eff, tk_eff) * 1.3 > vmem_cap:
        tm_eff = max(128, _round_up(tm_eff // 2, 128))

    T_pad = _round_up(T, tm_eff)
    grid = (T_pad // tm_eff, n_hidden_p // tk_eff)

    # x: pad / cast to bf16 once here (no per-K cast in the kernel); skip the
    # padding copy entirely when already aligned.
    if T_pad == T and n_state_p == n_state:
        x_p = x.astype(jnp.bfloat16)
    else:
        x_p = jnp.zeros((T_pad, n_state_p), jnp.bfloat16).at[
            :T, :n_state].set(x.astype(jnp.bfloat16))
    seed_arr = jnp.array([seed], dtype=jnp.int32)

    need = vmem_need(tm_eff, tk_eff)
    vmem_limit = min(vmem_cap, max(32 << 20, int(need * 1.4) + (4 << 20)))

    kernel = functools.partial(ffn_kernel, p_dropout=float(p_dropout),
                               training=bool(training), tm=tm_eff)

    scratch_shapes = []
    if use_dropout:
        scratch_shapes.append(pltpu.VMEM((tm_eff, n_state_p), jnp.int8))

    out_p = pl.pallas_call(
        kernel,
        out_shape=jax.ShapeDtypeStruct((T_pad, n_state_p), jnp.float32),
        grid=grid,
        in_specs=[
            pl.BlockSpec(memory_space=pltpu.SMEM),                    # seed
            pl.BlockSpec((tm_eff, n_state_p), lambda i, k: (i, 0)),   # x row tile
            pl.BlockSpec((n_state_p, tk_eff), lambda i, k: (0, k)),   # W1 K-tile
            pl.BlockSpec((1, tk_eff), lambda i, k: (0, k)),           # b1 K-tile
            pl.BlockSpec((tk_eff, n_state_p), lambda i, k: (k, 0)),   # W2 K-tile
            pl.BlockSpec((1, n_state_p), lambda i, k: (0, 0)),        # b2
        ],
        out_specs=pl.BlockSpec((tm_eff, n_state_p), lambda i, k: (i, 0)),
        scratch_shapes=scratch_shapes,
        compiler_params=pltpu.CompilerParams(
            dimension_semantics=("parallel", "arbitrary"),
            vmem_limit_bytes=vmem_limit),
    )(seed_arr, x_p, params["w1"], params["b1"], params["w2"], params["b2"])

    out = out_p if (T_pad == T and n_state_p == n_state) else out_p[:T, :n_state]
    if out.dtype != x.dtype:
        out = out.astype(x.dtype)
    return out


def _init_params(key, n_state, n_hidden):
    """Weights ~ N(0, 0.02); biases ~ U(-1/sqrt(fan_in), 1/sqrt(fan_in))."""
    k1, k2, k3, k4 = jax.random.split(key, 4)
    w1 = (0.02 * jax.random.normal(k1, (n_state, n_hidden))).astype(jnp.float32)
    w2 = (0.02 * jax.random.normal(k2, (n_hidden, n_state))).astype(jnp.float32)
    bound1 = 1.0 / (n_state ** 0.5)
    bound2 = 1.0 / (n_hidden ** 0.5)
    b1 = jax.random.uniform(k3, (n_hidden,), minval=-bound1, maxval=bound1).astype(jnp.float32)
    b2 = jax.random.uniform(k4, (n_state,), minval=-bound2, maxval=bound2).astype(jnp.float32)
    return w1, b1, w2, b2


if __name__ == "__main__":
    batch, seq, n_state, n_hidden = 2, 8, 32, 64

    key = jax.random.PRNGKey(0)
    kx, kp = jax.random.split(key)
    x = jax.random.normal(kx, (batch, seq, n_state), dtype=jnp.float32)
    w1, b1, w2, b2 = _init_params(kp, n_state, n_hidden)

    # One-time bf16 padding of the weights (reused by every forward call).
    params = pad_ffn_params(w1, b1, w2, b2)

    # flatten (batch, seq) -> tokens for the kernel, restore after
    x2d = x.reshape(batch * seq, n_state)

    # eval-mode forward (dropout = identity) -> deterministic, checkable
    out2d = positionwise_feed_forward(x2d, params, p_dropout=0.5, training=False)
    out = out2d.reshape(batch, seq, n_state)
    jax.block_until_ready(out)

    # pure-JAX f32 reference (kernel uses bf16 MXU inputs -> relaxed tolerance)
    ref2d = jnp.maximum(x2d @ w1 + b1, 0.0) @ w2 + b2
    ref = ref2d.reshape(batch, seq, n_state)
    assert jnp.allclose(out, ref, atol=2e-2, rtol=2e-2), "mismatch vs reference"

    # training path: inverted dropout with keep-prob 0.5
    out_train2d = positionwise_feed_forward(x2d, params, p_dropout=0.5,
                                            training=True, seed=123)
    jax.block_until_ready(out_train2d)
    kept = out_train2d != 0.0
    frac = float(jnp.mean(kept.astype(jnp.float32)))
    assert 0.2 < frac < 0.8, f"dropout keep-fraction off: {frac}"
    assert jnp.allclose(jnp.where(kept, out_train2d, 0.0),
                        jnp.where(kept, 2.0 * out2d, 0.0),
                        atol=1e-5, rtol=1e-5), "dropout scaling mismatch"

    print("KERNEL_OK")
</pallas_src>

<mosaic_0001>
module attributes {stable_mosaic.version = 11 : i64} {
  func.func @ffn_kernel(%arg0: i32, %arg1: i32, %arg2: memref<1xi32, #tpu.memory_space<smem>>, %arg3: memref<128x128xbf16, #tpu.memory_space<vmem>>, %arg4: memref<128x128xbf16, #tpu.memory_space<vmem>>, %arg5: memref<1x128xf32, #tpu.memory_space<vmem>>, %arg6: memref<128x128xbf16, #tpu.memory_space<vmem>>, %arg7: memref<1x128xf32, #tpu.memory_space<vmem>>, %arg8: memref<128x128xf32, #tpu.memory_space<vmem>>) attributes {dimension_semantics = [#tpu.dimension_semantics<parallel>, #tpu.dimension_semantics<arbitrary>], iteration_bounds = array<i64: 1, 1>, scalar_prefetch = 0 : i64, scratch_operands = 0 : i64, tpu.core_type = #tpu.core_type<tc>, window_params = [{transform_indices = @transform_0, window_bounds = array<i64: 1>}, {transform_indices = @transform_1, window_bounds = array<i64: 128, 128>}, {transform_indices = @transform_2, window_bounds = array<i64: 128, 128>}, {transform_indices = @transform_3, window_bounds = array<i64: 1, 128>}, {transform_indices = @transform_4, window_bounds = array<i64: 128, 128>}, {pipeline_mode = #tpu.pipeline_mode<synchronous>, transform_indices = @transform_5, window_bounds = array<i64: 1, 128>}, {transform_indices = @transform_6, window_bounds = array<i64: 128, 128>}]} {
    %c0 = arith.constant 0 : index
    %c0_0 = arith.constant 0 : index
    %0 = vector.load %arg3[%c0, %c0_0] : memref<128x128xbf16, #tpu.memory_space<vmem>>, vector<128x128xbf16>
    %c0_1 = arith.constant 0 : index
    %c0_2 = arith.constant 0 : index
    %1 = vector.load %arg4[%c0_1, %c0_2] : memref<128x128xbf16, #tpu.memory_space<vmem>>, vector<128x128xbf16>
    %cst = arith.constant dense<0.000000e+00> : vector<128x128xf32>
    %2 = tpu.matmul %0, %1, %cst {dimension_numbers = #tpu.dot_dimension_numbers<[1], [0], [0], [1], [0, 0, 1, 1], [], []>} : vector<128x128xbf16>, vector<128x128xbf16>, vector<128x128xf32> -> vector<128x128xf32>
    %c0_3 = arith.constant 0 : index
    %c0_4 = arith.constant 0 : index
    %3 = vector.load %arg5[%c0_3, %c0_4] : memref<1x128xf32, #tpu.memory_space<vmem>>, vector<1x128xf32>
    %4 = vector.broadcast %3 : vector<1x128xf32> to vector<128x128xf32>
    %5 = arith.addf %2, %4 : vector<128x128xf32>
    %cst_5 = arith.constant 0.000000e+00 : f32
    %6 = vector.broadcast %cst_5 : f32 to vector<128x128xf32>
    %7 = arith.maximumf %5, %6 : vector<128x128xf32>
    %8 = arith.truncf %7 : vector<128x128xf32> to vector<128x128xbf16>
    %c0_6 = arith.constant 0 : index
    %c0_7 = arith.constant 0 : index
    %9 = vector.load %arg6[%c0_6, %c0_7] : memref<128x128xbf16, #tpu.memory_space<vmem>>, vector<128x128xbf16>
    %cst_8 = arith.constant dense<0.000000e+00> : vector<128x128xf32>
    %10 = tpu.matmul %8, %9, %cst_8 {dimension_numbers = #tpu.dot_dimension_numbers<[1], [0], [0], [1], [0, 0, 1, 1], [], []>} : vector<128x128xbf16>, vector<128x128xbf16>, vector<128x128xf32> -> vector<128x128xf32>
    %c0_i32 = arith.constant 0 : i32
    %11 = arith.cmpi eq, %arg1, %c0_i32 : i32
    %12 = arith.extui %11 : i1 to i32
    %c0_i32_9 = arith.constant 0 : i32
    %13 = arith.cmpi ne, %12, %c0_i32_9 : i32
    scf.if %13 {
      %c0_14 = arith.constant 0 : index
      %c0_15 = arith.constant 0 : index
      %20 = vector.load %arg8[%c0_14, %c0_15] : memref<128x128xf32, #tpu.memory_space<vmem>>, vector<128x128xf32>
      tpu.vector_store %arg8[%c0_14, %c0_15], %10 {strides = array<i32>} : memref<128x128xf32, #tpu.memory_space<vmem>>, vector<128x128xf32>,
    } else {
    }
    %c0_i32_10 = arith.constant 0 : i32
    %14 = arith.cmpi sgt, %arg1, %c0_i32_10 : i32
    %15 = arith.extui %14 : i1 to i32
    %c0_i32_11 = arith.constant 0 : i32
    %16 = arith.cmpi ne, %15, %c0_i32_11 : i32
    scf.if %16 {
      %c0_14 = arith.constant 0 : index
      %c0_15 = arith.constant 0 : index
      %20 = vector.load %arg8[%c0_14, %c0_15] : memref<128x128xf32, #tpu.memory_space<vmem>>, vector<128x128xf32>
      %21 = arith.addf %20, %10 : vector<128x128xf32>
      %c0_16 = arith.constant 0 : index
      %c0_17 = arith.constant 0 : index
      %22 = vector.load %arg8[%c0_16, %c0_17] : memref<128x128xf32, #tpu.memory_space<vmem>>, vector<128x128xf32>
      tpu.vector_store %arg8[%c0_16, %c0_17], %21 {strides = array<i32>} : memref<128x128xf32, #tpu.memory_space<vmem>>, vector<128x128xf32>,
    } else {
    }
    %c0_i32_12 = arith.constant 0 : i32
    %17 = arith.cmpi eq, %arg1, %c0_i32_12 : i32
    %18 = arith.extui %17 : i1 to i32
    %c0_i32_13 = arith.constant 0 : i32
    %19 = arith.cmpi ne, %18, %c0_i32_13 : i32
    scf.if %19 {
      %c0_14 = arith.constant 0 : index
      %c0_15 = arith.constant 0 : index
      %20 = vector.load %arg8[%c0_14, %c0_15] : memref<128x128xf32, #tpu.memory_space<vmem>>, vector<128x128xf32>
      %c0_16 = arith.constant 0 : index
      %c0_17 = arith.constant 0 : index
      %21 = vector.load %arg7[%c0_16, %c0_17] : memref<1x128xf32, #tpu.memory_space<vmem>>, vector<1x128xf32>
      %22 = vector.broadcast %21 : vector<1x128xf32> to vector<128x128xf32>
      %23 = arith.addf %20, %22 : vector<128x128xf32>
      %c0_18 = arith.constant 0 : index
      %c0_19 = arith.constant 0 : index
      %24 = vector.load %arg8[%c0_18, %c0_19] : memref<128x128xf32, #tpu.memory_space<vmem>>, vector<128x128xf32>
      tpu.vector_store %arg8[%c0_18, %c0_19], %23 {strides = array<i32>} : memref<128x128xf32, #tpu.memory_space<vmem>>, vector<128x128xf32>,
    } else {
    }
    return
  }
  func.func @transform_0(%arg0: i32, %arg1: i32) -> i32 {
    %c0_i32 = arith.constant 0 : i32
    %c0_i32_0 = arith.constant 0 : i32
    return %c0_i32 : i32
  }
  func.func @transform_1(%arg0: i32, %arg1: i32) -> (i32, i32) {
    %c0_i32 = arith.constant 0 : i32
    %c0_i32_0 = arith.constant 0 : i32
    return %arg0, %c0_i32 : i32, i32
  }
  func.func @transform_2(%arg0: i32, %arg1: i32) -> (i32, i32) {
    %c0_i32 = arith.constant 0 : i32
    %c0_i32_0 = arith.constant 0 : i32
    return %c0_i32, %arg1 : i32, i32
  }
  func.func @transform_3(%arg0: i32, %arg1: i32) -> (i32, i32) {
    %c0_i32 = arith.constant 0 : i32
    %c0_i32_0 = arith.constant 0 : i32
    return %c0_i32, %arg1 : i32, i32
  }
  func.func @transform_4(%arg0: i32, %arg1: i32) -> (i32, i32) {
    %c0_i32 = arith.constant 0 : i32
    %c0_i32_0 = arith.constant 0 : i32
    return %arg1, %c0_i32 : i32, i32
  }
  func.func @transform_5(%arg0: i32, %arg1: i32) -> (i32, i32) {
    %c0_i32 = arith.constant 0 : i32
    %c0_i32_0 = arith.constant 0 : i32
    %c0_i32_1 = arith.constant 0 : i32
    return %c0_i32, %c0_i32_0 : i32, i32
  }
  func.func @transform_6(%arg0: i32, %arg1: i32) -> (i32, i32) {
    %c0_i32 = arith.constant 0 : i32
    %c0_i32_0 = arith.constant 0 : i32
    return %arg0, %c0_i32 : i32, i32
  }
}

</mosaic_0001>

<llo_original>
// kernel: tpu_custom_call.1
$region0: #{tpu_custom_call.1}
  #allocation0 [shape = 'u32[]', space=smem, size = 0x4, offset = 0x4, fixed_abs, tag = 'smem constant byte address 0x4 - core index']
  #allocation1 [shape = 'u32[144,128]{1,0:T(1,128)}', space=vmem, size = 0x12000, scoped, tag = 'internal scratch']
  #allocation2 [shape = 's32[1]{0:T(128)S(6)}', space=smem, size = 0x200, scoped, tag = 'scoped memory for tpu_custom_call.1']
  %s0 = inlined_call_operand.<no memory space> [shape: s32[1], index: 0, kind: input, shape index: {}]
  %s1 = inlined_call_operand.hbm [shape: bf16[128,128], index: 1, kind: input, shape index: {}]
  %s2 = inlined_call_operand.hbm [shape: bf16[128,128], index: 2, kind: input, shape index: {}]
  %s3 = inlined_call_operand.vmem [shape: f32[1,128], index: 3, kind: input, shape index: {}]
  %s4 = inlined_call_operand.hbm [shape: bf16[128,128], index: 4, kind: input, shape index: {}]
  %s5 = inlined_call_operand.vmem [shape: f32[1,128], index: 5, kind: input, shape index: {}]
  %s6 = inlined_call_operand.hbm [shape: f32[128,128], index: 6, kind: output, shape index: {}]
  %s7 = sld [smem:[#allocation0]]
  $region58: #{tpu_custom_call.1} parent=0
    _
  %s9 = ssub.s32 1, %s7
  %s10 = scalar_select 0, %s9, %s7
  %11 = sst [smem:[#allocation2]] %s0
  $region1: #{tpu_custom_call.1} parent=0
    #allocation3 [shape = 'u8[32768]{0}', space=vmem, size = 0x8000, scoped, tag = 'input window, operand 1, single buffered']
    #allocation4 [shape = 's32[1]{0}', space=sflag, size = 0x4, scoped, tag = 'scoped memory for tpu_custom_call.1']
    #allocation5 [shape = 's32[1]{0}', space=sflag, size = 0x4, scoped, tag = 'scoped memory for tpu_custom_call.1']
    #allocation6 [shape = 'u8[32768]{0}', space=vmem, size = 0x8000, scoped, tag = 'input window, operand 2, single buffered']
    #allocation7 [shape = 's32[1]{0}', space=sflag, size = 0x4, scoped, tag = 'scoped memory for tpu_custom_call.1']
    #allocation8 [shape = 'u8[32768]{0}', space=vmem, size = 0x8000, scoped, tag = 'input window, operand 4, single buffered']
    #allocation9 [shape = 'u8[65536]{0}', space=vmem, size = 0x10000, scoped, tag = 'output window, operand 0, single buffered']
    %12 = vsyncpa [#allocation4], 0
    %13 = vsyncpa [#allocation7], 0
    %14 = vsyncpa [#allocation5], 0
    // Predicated region
    $region2: #{tpu_custom_call.1} parent=1 // pred_check
      _
    $region3: #{tpu_custom_call.1} parent=1 // pred_check_branch
      %16 = sbr.rel (0) target = $region5
    $region4: #{tpu_custom_call.1} parent=1 // pred_region
      _
    $region5: #{tpu_custom_call.1} parent=1 // pred_fallthru
      _
    // Predicated region
    $region6: #{tpu_custom_call.1} parent=1 // pred_check
      _
    $region7: #{tpu_custom_call.1} parent=1 // pred_check_branch
      %18 = sbr.rel (0) target = $region9
    $region8: #{tpu_custom_call.1} parent=1 // pred_region
      %s20 = ssub.s32 1024, 1024
      %21 = vsyncadd [#allocation4], %s20
      %s22 = sshll.u32 [#allocation3], 4
      %s23 = int_to_ptr.vmem [resolvable:$true] %s22
      %28 = dma.hbm_to_vmem [thread:$0]  %s1, 1024, %s23, [#allocation4], 64, 64, 4
    $region9: #{tpu_custom_call.1} parent=1 // pred_fallthru
      _
    // Predicated region
    $region10: #{tpu_custom_call.1} parent=1 // pred_check
      _
    $region11: #{tpu_custom_call.1} parent=1 // pred_check_branch
      %30 = sbr.rel (0) target = $region13
    $region12: #{tpu_custom_call.1} parent=1 // pred_region
      %s32 = ssub.s32 1024, 1024
      %33 = vsyncadd [#allocation7], %s32
      %s34 = sshll.u32 [#allocation6], 4
      %s35 = int_to_ptr.vmem [resolvable:$true] %s34
      %40 = dma.hbm_to_vmem [thread:$0]  %s2, 1024, %s35, [#allocation7], 64, 64, 4
    $region13: #{tpu_custom_call.1} parent=1 // pred_fallthru
      _
    // Predicated region
    $region14: #{tpu_custom_call.1} parent=1 // pred_check
      _
    $region15: #{tpu_custom_call.1} parent=1 // pred_check_branch
      %42 = sbr.rel (0) target = $region17
    $region16: #{tpu_custom_call.1} parent=1 // pred_region
      _
    $region17: #{tpu_custom_call.1} parent=1 // pred_fallthru
      _
    // Predicated region
    $region18: #{tpu_custom_call.1} parent=1 // pred_check
      _
    $region19: #{tpu_custom_call.1} parent=1 // pred_check_branch
      %44 = sbr.rel (0) target = $region21
    $region20: #{tpu_custom_call.1} parent=1 // pred_region
      %s46 = ssub.s32 1024, 1024
      %47 = vsyncadd [#allocation7], %s46
      %s48 = sshll.u32 [#allocation8], 4
      %s49 = int_to_ptr.vmem [resolvable:$true] %s48
      %54 = dma.hbm_to_vmem [thread:$0]  %s4, 1024, %s49, [#allocation7], 64, 64, 4
    $region21: #{tpu_custom_call.1} parent=1 // pred_fallthru
      _
    // Predicated region
    $region22: #{tpu_custom_call.1} parent=1 // pred_check
      _
    $region23: #{tpu_custom_call.1} parent=1 // pred_check_branch
      %56 = sbr.rel (0) target = $region25
    $region24: #{tpu_custom_call.1} parent=1 // pred_region
      _
    $region25: #{tpu_custom_call.1} parent=1 // pred_fallthru
      _
    // Predicated region
    $region26: #{tpu_custom_call.1} parent=1 // pred_check
      _
    $region27: #{tpu_custom_call.1} parent=1 // pred_check_branch
      %58 = sbr.rel (0) target = $region29
    $region28: #{tpu_custom_call.1} parent=1 // pred_region
      %59 = dma.done [#allocation4], 1024
    $region29: #{tpu_custom_call.1} parent=1 // pred_fallthru
      _
    // Predicated region
    $region30: #{tpu_custom_call.1} parent=1 // pred_check
      _
    $region31: #{tpu_custom_call.1} parent=1 // pred_check_branch
      %61 = sbr.rel (0) target = $region33
    $region32: #{tpu_custom_call.1} parent=1 // pred_region
      %62 = dma.done [#allocation7], 1024
    $region33: #{tpu_custom_call.1} parent=1 // pred_fallthru
      _
    // Predicated region
    $region34: #{tpu_custom_call.1} parent=1 // pred_check
      _
    $region35: #{tpu_custom_call.1} parent=1 // pred_check_branch
      %64 = sbr.rel (0) target = $region37
    $region36: #{tpu_custom_call.1} parent=1 // pred_region
      %65 = dma.done [#allocation7], 1024
    $region37: #{tpu_custom_call.1} parent=1 // pred_fallthru
      _
    %v67 = vld [vmem:[#allocation3] sm:$0xf]
    %v68 = vld [vmem:[#allocation3 + $0x4] sm:$0xf]
    %v69 = vld [vmem:[#allocation3 + $0x8] sm:$0xf]
    %v70 = vld [vmem:[#allocation3 + $0xc] sm:$0xf]
    %v71 = vld [vmem:[#allocation3 + $0x10] sm:$0xf]
    %v72 = vld [vmem:[#allocation3 + $0x14] sm:$0xf]
    %v73 = vld [vmem:[#allocation3 + $0x18] sm:$0xf]
    %v74 = vld [vmem:[#allocation3 + $0x1c] sm:$0xf]
    %v75 = vld [vmem:[#allocation3 + $0x20] sm:$0xf]
    %v76 = vld [vmem:[#allocation3 + $0x24] sm:$0xf]
    %v77 = vld [vmem:[#allocation3 + $0x28] sm:$0xf]
    %v78 = vld [vmem:[#allocation3 + $0x2c] sm:$0xf]
    %v79 = vld [vmem:[#allocation3 + $0x30] sm:$0xf]
    %v80 = vld [vmem:[#allocation3 + $0x34] sm:$0xf]
    %v81 = vld [vmem:[#allocation3 + $0x38] sm:$0xf]
    %v82 = vld [vmem:[#allocation3 + $0x3c] sm:$0xf]
    %v83 = vld [vmem:[#allocation6] sm:$0xf]
    %v84 = vld [vmem:[#allocation6 + $0x4] sm:$0xf]
    %v85 = vld [vmem:[#allocation6 + $0x8] sm:$0xf]
    %v86 = vld [vmem:[#allocation6 + $0xc] sm:$0xf]
    %v87 = vld [vmem:[#allocation6 + $0x10] sm:$0xf]
    %v88 = vld [vmem:[#allocation6 + $0x14] sm:$0xf]
    %v89 = vld [vmem:[#allocation6 + $0x18] sm:$0xf]
    %v90 = vld [vmem:[#allocation6 + $0x1c] sm:$0xf]
    %v91 = vld [vmem:[#allocation6 + $0x20] sm:$0xf]
    %v92 = vld [vmem:[#allocation6 + $0x24] sm:$0xf]
    %v93 = vld [vmem:[#allocation6 + $0x28] sm:$0xf]
    %v94 = vld [vmem:[#allocation6 + $0x2c] sm:$0xf]
    %v95 = vld [vmem:[#allocation6 + $0x30] sm:$0xf]
    %v96 = vld [vmem:[#allocation6 + $0x34] sm:$0xf]
    %v97 = vld [vmem:[#allocation6 + $0x38] sm:$0xf]
    %v98 = vld [vmem:[#allocation6 + $0x3c] sm:$0xf]
    %v99 = vld [vmem:[%s3] sm:$0x1]
    %v101 = vlaneseq
    %v102 = vshrl.u32 %v101, 7
    %v103 = vsub.s32 0, %v102
    %v104 = vrot.slane %v99, %v103
    %v122 = vunpack.c.l.b16 %v67
    %v123 = vunpack.c.l.b16 %v68
    %v124 = vunpack.c.l.b16 %v69
    %v125 = vunpack.c.l.b16 %v70
    %v126 = vunpack.c.l.b16 %v71
    %v127 = vunpack.c.l.b16 %v72
    %v128 = vunpack.c.l.b16 %v73
    %v129 = vunpack.c.l.b16 %v74
    %v130 = vunpack.c.l.b16 %v75
    %v131 = vunpack.c.l.b16 %v76
    %v132 = vunpack.c.l.b16 %v77
    %v133 = vunpack.c.l.b16 %v78
    %v134 = vunpack.c.l.b16 %v79
    %v135 = vunpack.c.l.b16 %v80
    %v136 = vunpack.c.l.b16 %v81
    %v137 = vunpack.c.l.b16 %v82
    %v138 = vpack.c.b16 %v123, %v122
    %v139 = vpack.c.b16 %v125, %v124
    %v140 = vpack.c.b16 %v127, %v126
    %v141 = vpack.c.b16 %v129, %v128
    %v142 = vpack.c.b16 %v131, %v130
    %v143 = vpack.c.b16 %v133, %v132
    %v144 = vpack.c.b16 %v135, %v134
    %v145 = vpack.c.b16 %v137, %v136
    %v170 = vunpack.c.l.b16 %v83
    %v171 = vunpack.c.l.b16 %v84
    %v172 = vunpack.c.l.b16 %v85
    %v173 = vunpack.c.l.b16 %v86
    %v174 = vunpack.c.l.b16 %v87
    %v175 = vunpack.c.l.b16 %v88
    %v176 = vunpack.c.l.b16 %v89
    %v177 = vunpack.c.l.b16 %v90
    %v178 = vunpack.c.l.b16 %v91
    %v179 = vunpack.c.l.b16 %v92
    %v180 = vunpack.c.l.b16 %v93
    %v181 = vunpack.c.l.b16 %v94
    %v182 = vunpack.c.l.b16 %v95
    %v183 = vunpack.c.l.b16 %v96
    %v184 = vunpack.c.l.b16 %v97
    %v185 = vunpack.c.l.b16 %v98
    %v186 = vpack.c.b16 %v171, %v170
    %v187 = vpack.c.b16 %v173, %v172
    %v188 = vpack.c.b16 %v175, %v174
    %v189 = vpack.c.b16 %v177, %v176
    %v190 = vpack.c.b16 %v179, %v178
    %v191 = vpack.c.b16 %v181, %v180
    %v192 = vpack.c.b16 %v183, %v182
    %v193 = vpack.c.b16 %v185, %v184
    %202 = vmatprep.subr.bf16.mxu0 0
    %203 = vmatpush1.bf16.msra.mxu0 %v186
    %204 = vmatprep.subr.bf16.mxu0 0
    %205 = vmatpush1.bf16.msra.mxu0 %v187
    %206 = vmatprep.subr.bf16.mxu0 0
    %207 = vmatpush1.bf16.msra.mxu0 %v188
    %208 = vmatprep.subr.bf16.mxu0 0
    %209 = vmatpush1.bf16.msra.mxu0 %v189
    %210 = vmatprep.subr.bf16.mxu0 0
    %211 = vmatpush1.bf16.msra.mxu0 %v190
    %212 = vmatprep.subr.bf16.mxu0 0
    %213 = vmatpush1.bf16.msra.mxu0 %v191
    %214 = vmatprep.subr.bf16.mxu0 0
    %215 = vmatpush1.bf16.msra.mxu0 %v192
    %216 = vmatprep.subr.bf16.mxu0 0
    %217 = vmatpush1.bf16.msra.mxu0 %v193
    %218 = vmatprep.subr.bf16.mxu0 0
    %219 = vmatpush1.bf16.msra.mxu0 0
    %220 = vmatprep.subr.bf16.mxu0 0
    %221 = vmatpush1.bf16.msra.mxu0 0
    %222 = vmatprep.subr.bf16.mxu0 0
    %223 = vmatpush1.bf16.msra.mxu0 0
    %224 = vmatprep.subr.bf16.mxu0 0
    %225 = vmatpush1.bf16.msra.mxu0 0
    %226 = vmatprep.subr.bf16.mxu0 0
    %227 = vmatpush1.bf16.msra.mxu0 0
    %228 = vmatprep.subr.bf16.mxu0 0
    %229 = vmatpush1.bf16.msra.mxu0 0
    %230 = vmatprep.subr.bf16.mxu0 0
    %231 = vmatpush1.bf16.msra.mxu0 0
    %232 = vmatprep.subr.bf16.mxu0 0
    %233 = vmatpush1.bf16.msra.mxu0 0
    %234 = vmatprep.mubr.bf16.mxu0 0
    %235 = vmatmul.mubr.bf16.gmra.mrb[0].mxu0 %v138
    %v236 = vpop.f32.mrb[0].mxu0
    %v237 = vadd.f32 %v104, %v236
    %v238 = vpop.f32.mrb[0].mxu0
    %v239 = vpop.f32.mrb[0].mxu0
    %v240 = vadd.f32 %v104, %v239
    %v241 = vpop.f32.mrb[0].mxu0
    %242 = vmatprep.mubr.bf16.mxu0 0
    %243 = vmatmul.mubr.bf16.gmra.mrb[0].mxu0 %v139
    %v244 = vpop.f32.mrb[0].mxu0
    %v245 = vadd.f32 %v104, %v244
    %v246 = vpop.f32.mrb[0].mxu0
    %v247 = vpop.f32.mrb[0].mxu0
    %v248 = vadd.f32 %v104, %v247
    %v249 = vpop.f32.mrb[0].mxu0
    %250 = vmatprep.mubr.bf16.mxu0 0
    %251 = vmatmul.mubr.bf16.gmra.mrb[0].mxu0 %v140
    %v252 = vpop.f32.mrb[0].mxu0
    %v253 = vadd.f32 %v104, %v252
    %v254 = vpop.f32.mrb[0].mxu0
    %v255 = vpop.f32.mrb[0].mxu0
    %v256 = vadd.f32 %v104, %v255
    %v257 = vpop.f32.mrb[0].mxu0
    %258 = vmatprep.mubr.bf16.mxu0 0
    %259 = vmatmul.mubr.bf16.gmra.mrb[0].mxu0 %v141
    %v260 = vpop.f32.mrb[0].mxu0
    %v261 = vadd.f32 %v104, %v260
    %v262 = vpop.f32.mrb[0].mxu0
    %v263 = vpop.f32.mrb[0].mxu0
    %v264 = vadd.f32 %v104, %v263
    %v265 = vpop.f32.mrb[0].mxu0
    %266 = vmatprep.mubr.bf16.mxu0 0
    %267 = vmatmul.mubr.bf16.gmra.mrb[0].mxu0 %v142
    %v268 = vpop.f32.mrb[0].mxu0
    %v269 = vadd.f32 %v104, %v268
    %v270 = vpop.f32.mrb[0].mxu0
    %v271 = vpop.f32.mrb[0].mxu0
    %v272 = vadd.f32 %v104, %v271
    %v273 = vpop.f32.mrb[0].mxu0
    %274 = vmatprep.mubr.bf16.mxu0 0
    %275 = vmatmul.mubr.bf16.gmra.mrb[0].mxu0 %v143
    %v276 = vpop.f32.mrb[0].mxu0
    %v277 = vadd.f32 %v104, %v276
    %v278 = vpop.f32.mrb[0].mxu0
    %v279 = vpop.f32.mrb[0].mxu0
    %v280 = vadd.f32 %v104, %v279
    %v281 = vpop.f32.mrb[0].mxu0
    %282 = vmatprep.mubr.bf16.mxu0 0
    %283 = vmatmul.mubr.bf16.gmra.mrb[0].mxu0 %v144
    %v284 = vpop.f32.mrb[0].mxu0
    %v285 = vadd.f32 %v104, %v284
    %v286 = vpop.f32.mrb[0].mxu0
    %v287 = vpop.f32.mrb[0].mxu0
    %v288 = vadd.f32 %v104, %v287
    %v289 = vpop.f32.mrb[0].mxu0
    %290 = vmatprep.mubr.bf16.mxu0 0
    %291 = vmatmul.mubr.bf16.gmra.mrb[0].mxu0 %v145
    %v292 = vpop.f32.mrb[0].mxu0
    %v293 = vadd.f32 %v104, %v292
    %v294 = vpop.f32.mrb[0].mxu0
    %v295 = vpop.f32.mrb[0].mxu0
    %v296 = vadd.f32 %v104, %v295
    %v297 = vpop.f32.mrb[0].mxu0
    %298 = vdwg.mxu0
    %v299 = vmax.f32 %v237, 0.0
    %v300 = vmax.f32 %v240, 0.0
    %v301 = vmax.f32 %v245, 0.0
    %v302 = vmax.f32 %v248, 0.0
    %v303 = vmax.f32 %v253, 0.0
    %v304 = vmax.f32 %v256, 0.0
    %v305 = vmax.f32 %v261, 0.0
    %v306 = vmax.f32 %v264, 0.0
    %v307 = vmax.f32 %v269, 0.0
    %v308 = vmax.f32 %v272, 0.0
    %v309 = vmax.f32 %v277, 0.0
    %v310 = vmax.f32 %v280, 0.0
    %v311 = vmax.f32 %v285, 0.0
    %v312 = vmax.f32 %v288, 0.0
    %v313 = vmax.f32 %v293, 0.0
    %v314 = vmax.f32 %v296, 0.0
    %v315 = vpack.c.bf16 %v300, %v299
    %v316 = vpack.c.bf16 %v302, %v301
    %v317 = vpack.c.bf16 %v304, %v303
    %v318 = vpack.c.bf16 %v306, %v305
    %v319 = vpack.c.bf16 %v308, %v307
    %v320 = vpack.c.bf16 %v310, %v309
    %v321 = vpack.c.bf16 %v312, %v311
    %v322 = vpack.c.bf16 %v314, %v313
    %v323 = vld [vmem:[#allocation8] sm:$0xf]
    %v324 = vld [vmem:[#allocation8 + $0x4] sm:$0xf]
    %v325 = vld [vmem:[#allocation8 + $0x8] sm:$0xf]
    %v326 = vld [vmem:[#allocation8 + $0xc] sm:$0xf]
    %v327 = vld [vmem:[#allocation8 + $0x10] sm:$0xf]
    %v328 = vld [vmem:[#allocation8 + $0x14] sm:$0xf]
    %v329 = vld [vmem:[#allocation8 + $0x18] sm:$0xf]
    %v330 = vld [vmem:[#allocation8 + $0x1c] sm:$0xf]
    %v331 = vld [vmem:[#allocation8 + $0x20] sm:$0xf]
    %v332 = vld [vmem:[#allocation8 + $0x24] sm:$0xf]
    %v333 = vld [vmem:[#allocation8 + $0x28] sm:$0xf]
    %v334 = vld [vmem:[#allocation8 + $0x2c] sm:$0xf]
    %v335 = vld [vmem:[#allocation8 + $0x30] sm:$0xf]
    %v336 = vld [vmem:[#allocation8 + $0x34] sm:$0xf]
    %v337 = vld [vmem:[#allocation8 + $0x38] sm:$0xf]
    %v338 = vld [vmem:[#allocation8 + $0x3c] sm:$0xf]
    %v355 = vunpack.c.l.b16 %v323
    %v356 = vunpack.c.l.b16 %v324
    %v357 = vunpack.c.l.b16 %v325
    %v358 = vunpack.c.l.b16 %v326
    %v359 = vunpack.c.l.b16 %v327
    %v360 = vunpack.c.l.b16 %v328
    %v361 = vunpack.c.l.b16 %v329
    %v362 = vunpack.c.l.b16 %v330
    %v363 = vunpack.c.l.b16 %v331
    %v364 = vunpack.c.l.b16 %v332
    %v365 = vunpack.c.l.b16 %v333
    %v366 = vunpack.c.l.b16 %v334
    %v367 = vunpack.c.l.b16 %v335
    %v368 = vunpack.c.l.b16 %v336
    %v369 = vunpack.c.l.b16 %v337
    %v370 = vunpack.c.l.b16 %v338
    %v371 = vpack.c.b16 %v356, %v355
    %v372 = vpack.c.b16 %v358, %v357
    %v373 = vpack.c.b16 %v360, %v359
    %v374 = vpack.c.b16 %v362, %v361
    %v375 = vpack.c.b16 %v364, %v363
    %v376 = vpack.c.b16 %v366, %v365
    %v377 = vpack.c.b16 %v368, %v367
    %v378 = vpack.c.b16 %v370, %v369
    %387 = vmatprep.subr.bf16.mxu0 0
    %388 = vmatpush1.bf16.msra.mxu0 %v371
    %389 = vmatprep.subr.bf16.mxu0 0
    %390 = vmatpush1.bf16.msra.mxu0 %v372
    %391 = vmatprep.subr.bf16.mxu0 0
    %392 = vmatpush1.bf16.msra.mxu0 %v373
    %393 = vmatprep.subr.bf16.mxu0 0
    %394 = vmatpush1.bf16.msra.mxu0 %v374
    %395 = vmatprep.subr.bf16.mxu0 0
    %396 = vmatpush1.bf16.msra.mxu0 %v375
    %397 = vmatprep.subr.bf16.mxu0 0
    %398 = vmatpush1.bf16.msra.mxu0 %v376
    %399 = vmatprep.subr.bf16.mxu0 0
    %400 = vmatpush1.bf16.msra.mxu0 %v377
    %401 = vmatprep.subr.bf16.mxu0 0
    %402 = vmatpush1.bf16.msra.mxu0 %v378
    %403 = vmatprep.subr.bf16.mxu0 0
    %404 = vmatpush1.bf16.msra.mxu0 0
    %405 = vmatprep.subr.bf16.mxu0 0
    %406 = vmatpush1.bf16.msra.mxu0 0
    %407 = vmatprep.subr.bf16.mxu0 0
    %408 = vmatpush1.bf16.msra.mxu0 0
    %409 = vmatprep.subr.bf16.mxu0 0
    %410 = vmatpush1.bf16.msra.mxu0 0
    %411 = vmatprep.subr.bf16.mxu0 0
    %412 = vmatpush1.bf16.msra.mxu0 0
    %413 = vmatprep.subr.bf16.mxu0 0
    %414 = vmatpush1.bf16.msra.mxu0 0
    %415 = vmatprep.subr.bf16.mxu0 0
    %416 = vmatpush1.bf16.msra.mxu0 0
    %417 = vmatprep.subr.bf16.mxu0 0
    %418 = vmatpush1.bf16.msra.mxu0 0
    %419 = vmatprep.mubr.bf16.mxu0 0
    %420 = vmatmul.mubr.bf16.gmra.mrb[0].mxu0 %v315
    %v421 = vpop.f32.mrb[0].mxu0
    %v422 = vadd.f32 0.0, %v421
    %v423 = vpop.f32.mrb[0].mxu0
    %v424 = vpop.f32.mrb[0].mxu0
    %v425 = vadd.f32 0.0, %v424
    %v426 = vpop.f32.mrb[0].mxu0
    %427 = vmatprep.mubr.bf16.mxu0 0
    %428 = vmatmul.mubr.bf16.gmra.mrb[0].mxu0 %v316
    %v429 = vpop.f32.mrb[0].mxu0
    %v430 = vadd.f32 0.0, %v429
    %v431 = vpop.f32.mrb[0].mxu0
    %v432 = vpop.f32.mrb[0].mxu0
    %v433 = vadd.f32 0.0, %v432
    %v434 = vpop.f32.mrb[0].mxu0
    %435 = vmatprep.mubr.bf16.mxu0 0
    %436 = vmatmul.mubr.bf16.gmra.mrb[0].mxu0 %v317
    %v437 = vpop.f32.mrb[0].mxu0
    %v438 = vadd.f32 0.0, %v437
    %v439 = vpop.f32.mrb[0].mxu0
    %v440 = vpop.f32.mrb[0].mxu0
    %v441 = vadd.f32 0.0, %v440
    %v442 = vpop.f32.mrb[0].mxu0
    %443 = vmatprep.mubr.bf16.mxu0 0
    %444 = vmatmul.mubr.bf16.gmra.mrb[0].mxu0 %v318
    %v445 = vpop.f32.mrb[0].mxu0
    %v446 = vadd.f32 0.0, %v445
    %v447 = vpop.f32.mrb[0].mxu0
    %v448 = vpop.f32.mrb[0].mxu0
    %v449 = vadd.f32 0.0, %v448
    %v450 = vpop.f32.mrb[0].mxu0
    %451 = vmatprep.mubr.bf16.mxu0 0
    %452 = vmatmul.mubr.bf16.gmra.mrb[0].mxu0 %v319
    %v453 = vpop.f32.mrb[0].mxu0
    %v454 = vadd.f32 0.0, %v453
    %v455 = vpop.f32.mrb[0].mxu0
    %v456 = vpop.f32.mrb[0].mxu0
    %v457 = vadd.f32 0.0, %v456
    %v458 = vpop.f32.mrb[0].mxu0
    %459 = vmatprep.mubr.bf16.mxu0 0
    %460 = vmatmul.mubr.bf16.gmra.mrb[0].mxu0 %v320
    %v461 = vpop.f32.mrb[0].mxu0
    %v462 = vadd.f32 0.0, %v461
    %v463 = vpop.f32.mrb[0].mxu0
    %v464 = vpop.f32.mrb[0].mxu0
    %v465 = vadd.f32 0.0, %v464
    %v466 = vpop.f32.mrb[0].mxu0
    %467 = vmatprep.mubr.bf16.mxu0 0
    %468 = vmatmul.mubr.bf16.gmra.mrb[0].mxu0 %v321
    %v469 = vpop.f32.mrb[0].mxu0
    %v470 = vadd.f32 0.0, %v469
    %v471 = vpop.f32.mrb[0].mxu0
    %v472 = vpop.f32.mrb[0].mxu0
    %v473 = vadd.f32 0.0, %v472
    %v474 = vpop.f32.mrb[0].mxu0
    %475 = vmatprep.mubr.bf16.mxu0 0
    %476 = vmatmul.mubr.bf16.gmra.mrb[0].mxu0 %v322
    %v477 = vpop.f32.mrb[0].mxu0
    %v478 = vadd.f32 0.0, %v477
    %v479 = vpop.f32.mrb[0].mxu0
    %v480 = vpop.f32.mrb[0].mxu0
    %v481 = vadd.f32 0.0, %v480
    %v482 = vpop.f32.mrb[0].mxu0
    %483 = vdwg.mxu0
    %p484 = scmp.eq.s32.totalorder 0, 0
    // Predicated region
    $region38: #{tpu_custom_call.1} parent=1 // pred_check
      %p485 = pneg %p484
    $region39: #{tpu_custom_call.1} parent=1 // pred_check_branch
      %487 = sbr.rel (%p485) target = $region41
    $region40: #{tpu_custom_call.1} parent=1 // pred_region
      %488 = vst [vmem:[#allocation9] sm:$0xff] %v422
      %489 = vst [vmem:[#allocation9 + $0x8] sm:$0xff] %v425
      %490 = vst [vmem:[#allocation9 + $0x10] sm:$0xff] %v430
      %491 = vst [vmem:[#allocation9 + $0x18] sm:$0xff] %v433
      %492 = vst [vmem:[#allocation9 + $0x20] sm:$0xff] %v438
      %493 = vst [vmem:[#allocation9 + $0x28] sm:$0xff] %v441
      %494 = vst [vmem:[#allocation9 + $0x30] sm:$0xff] %v446
      %495 = vst [vmem:[#allocation9 + $0x38] sm:$0xff] %v449
      %496 = vst [vmem:[#allocation9 + $0x40] sm:$0xff] %v454
      %497 = vst [vmem:[#allocation9 + $0x48] sm:$0xff] %v457
      %498 = vst [vmem:[#allocation9 + $0x50] sm:$0xff] %v462
      %499 = vst [vmem:[#allocation9 + $0x58] sm:$0xff] %v465
      %500 = vst [vmem:[#allocation9 + $0x60] sm:$0xff] %v470
      %501 = vst [vmem:[#allocation9 + $0x68] sm:$0xff] %v473
      %502 = vst [vmem:[#allocation9 + $0x70] sm:$0xff] %v478
      %503 = vst [vmem:[#allocation9 + $0x78] sm:$0xff] %v481
    $region41: #{tpu_custom_call.1} parent=1 // pred_fallthru
      _
    %p504 = scmp.gt.s32.totalorder 0, 0
    // Predicated region
    $region42: #{tpu_custom_call.1} parent=1 // pred_check
      %p505 = pneg %p504
    $region43: #{tpu_custom_call.1} parent=1 // pred_check_branch
      %507 = sbr.rel (%p505) target = $region45
    $region44: #{tpu_custom_call.1} parent=1 // pred_region
      %v508 = vld [vmem:[#allocation9] sm:$0xff]
      %v509 = vld [vmem:[#allocation9 + $0x8] sm:$0xff]
      %v510 = vld [vmem:[#allocation9 + $0x10] sm:$0xff]
      %v511 = vld [vmem:[#allocation9 + $0x18] sm:$0xff]
      %v512 = vld [vmem:[#allocation9 + $0x20] sm:$0xff]
      %v513 = vld [vmem:[#allocation9 + $0x28] sm:$0xff]
      %v514 = vld [vmem:[#allocation9 + $0x30] sm:$0xff]
      %v515 = vld [vmem:[#allocation9 + $0x38] sm:$0xff]
      %v516 = vld [vmem:[#allocation9 + $0x40] sm:$0xff]
      %v517 = vld [vmem:[#allocation9 + $0x48] sm:$0xff]
      %v518 = vld [vmem:[#allocation9 + $0x50] sm:$0xff]
      %v519 = vld [vmem:[#allocation9 + $0x58] sm:$0xff]
      %v520 = vld [vmem:[#allocation9 + $0x60] sm:$0xff]
      %v521 = vld [vmem:[#allocation9 + $0x68] sm:$0xff]
      %v522 = vld [vmem:[#allocation9 + $0x70] sm:$0xff]
      %v523 = vld [vmem:[#allocation9 + $0x78] sm:$0xff]
      %v524 = vadd.f32 %v508, %v422
      %v525 = vadd.f32 %v509, %v425
      %v526 = vadd.f32 %v510, %v430
      %v527 = vadd.f32 %v511, %v433
      %v528 = vadd.f32 %v512, %v438
      %v529 = vadd.f32 %v513, %v441
      %v530 = vadd.f32 %v514, %v446
      %v531 = vadd.f32 %v515, %v449
      %v532 = vadd.f32 %v516, %v454
      %v533 = vadd.f32 %v517, %v457
      %v534 = vadd.f32 %v518, %v462
      %v535 = vadd.f32 %v519, %v465
      %v536 = vadd.f32 %v520, %v470
      %v537 = vadd.f32 %v521, %v473
      %v538 = vadd.f32 %v522, %v478
      %v539 = vadd.f32 %v523, %v481
      %540 = vst [vmem:[#allocation9] sm:$0xff] %v524
      %541 = vst [vmem:[#allocation9 + $0x8] sm:$0xff] %v525
      %542 = vst [vmem:[#allocation9 + $0x10] sm:$0xff] %v526
      %543 = vst [vmem:[#allocation9 + $0x18] sm:$0xff] %v527
      %544 = vst [vmem:[#allocation9 + $0x20] sm:$0xff] %v528
      %545 = vst [vmem:[#allocation9 + $0x28] sm:$0xff] %v529
      %546 = vst [vmem:[#allocation9 + $0x30] sm:$0xff] %v530
      %547 = vst [vmem:[#allocation9 + $0x38] sm:$0xff] %v531
      %548 = vst [vmem:[#allocation9 + $0x40] sm:$0xff] %v532
      %549 = vst [vmem:[#allocation9 + $0x48] sm:$0xff] %v533
      %550 = vst [vmem:[#allocation9 + $0x50] sm:$0xff] %v534
      %551 = vst [vmem:[#allocation9 + $0x58] sm:$0xff] %v535
      %552 = vst [vmem:[#allocation9 + $0x60] sm:$0xff] %v536
      %553 = vst [vmem:[#allocation9 + $0x68] sm:$0xff] %v537
      %554 = vst [vmem:[#allocation9 + $0x70] sm:$0xff] %v538
      %555 = vst [vmem:[#allocation9 + $0x78] sm:$0xff] %v539
    $region45: #{tpu_custom_call.1} parent=1 // pred_fallthru
      _
    // Predicated region
    $region46: #{tpu_custom_call.1} parent=1 // pred_check
      %p556 = pneg %p484
    $region47: #{tpu_custom_call.1} parent=1 // pred_check_branch
      %558 = sbr.rel (%p556) target = $region49
    $region48: #{tpu_custom_call.1} parent=1 // pred_region
      %v559 = vld [vmem:[#allocation9] sm:$0xff]
      %v560 = vld [vmem:[#allocation9 + $0x8] sm:$0xff]
      %v561 = vld [vmem:[#allocation9 + $0x10] sm:$0xff]
      %v562 = vld [vmem:[#allocation9 + $0x18] sm:$0xff]
      %v563 = vld [vmem:[#allocation9 + $0x20] sm:$0xff]
      %v564 = vld [vmem:[#allocation9 + $0x28] sm:$0xff]
      %v565 = vld [vmem:[#allocation9 + $0x30] sm:$0xff]
      %v566 = vld [vmem:[#allocation9 + $0x38] sm:$0xff]
      %v567 = vld [vmem:[#allocation9 + $0x40] sm:$0xff]
      %v568 = vld [vmem:[#allocation9 + $0x48] sm:$0xff]
      %v569 = vld [vmem:[#allocation9 + $0x50] sm:$0xff]
      %v570 = vld [vmem:[#allocation9 + $0x58] sm:$0xff]
      %v571 = vld [vmem:[#allocation9 + $0x60] sm:$0xff]
      %v572 = vld [vmem:[#allocation9 + $0x68] sm:$0xff]
      %v573 = vld [vmem:[#allocation9 + $0x70] sm:$0xff]
      %v574 = vld [vmem:[#allocation9 + $0x78] sm:$0xff]
      %v575 = vld [vmem:[%s5] sm:$0x1]
      %v577 = vlaneseq
      %v578 = vshrl.u32 %v577, 7
      %v579 = vsub.s32 0, %v578
      %v580 = vrot.slane %v575, %v579
      %v582 = vadd.f32 %v559, %v580
      %v583 = vadd.f32 %v560, %v580
      %v584 = vadd.f32 %v561, %v580
      %v585 = vadd.f32 %v562, %v580
      %v586 = vadd.f32 %v563, %v580
      %v587 = vadd.f32 %v564, %v580
      %v588 = vadd.f32 %v565, %v580
      %v589 = vadd.f32 %v566, %v580
      %v590 = vadd.f32 %v567, %v580
      %v591 = vadd.f32 %v568, %v580
      %v592 = vadd.f32 %v569, %v580
      %v593 = vadd.f32 %v570, %v580
      %v594 = vadd.f32 %v571, %v580
      %v595 = vadd.f32 %v572, %v580
      %v596 = vadd.f32 %v573, %v580
      %v597 = vadd.f32 %v574, %v580
      %598 = vst [vmem:[#allocation9] sm:$0xff] %v582
      %599 = vst [vmem:[#allocation9 + $0x8] sm:$0xff] %v583
      %600 = vst [vmem:[#allocation9 + $0x10] sm:$0xff] %v584
      %601 = vst [vmem:[#allocation9 + $0x18] sm:$0xff] %v585
      %602 = vst [vmem:[#allocation9 + $0x20] sm:$0xff] %v586
      %603 = vst [vmem:[#allocation9 + $0x28] sm:$0xff] %v587
      %604 = vst [vmem:[#allocation9 + $0x30] sm:$0xff] %v588
      %605 = vst [vmem:[#allocation9 + $0x38] sm:$0xff] %v589
      %606 = vst [vmem:[#allocation9 + $0x40] sm:$0xff] %v590
      %607 = vst [vmem:[#allocation9 + $0x48] sm:$0xff] %v591
      %608 = vst [vmem:[#allocation9 + $0x50] sm:$0xff] %v592
      %609 = vst [vmem:[#allocation9 + $0x58] sm:$0xff] %v593
      %610 = vst [vmem:[#allocation9 + $0x60] sm:$0xff] %v594
      %611 = vst [vmem:[#allocation9 + $0x68] sm:$0xff] %v595
      %612 = vst [vmem:[#allocation9 + $0x70] sm:$0xff] %v596
      %613 = vst [vmem:[#allocation9 + $0x78] sm:$0xff] %v597
    $region49: #{tpu_custom_call.1} parent=1 // pred_fallthru
      _
    // Predicated region
    $region50: #{tpu_custom_call.1} parent=1 // pred_check
      _
    $region51: #{tpu_custom_call.1} parent=1 // pred_check_branch
      %615 = sbr.rel (0) target = $region53
    $region52: #{tpu_custom_call.1} parent=1 // pred_region
      %s617 = ssub.s32 2048, 2048
      %618 = vsyncadd [#allocation5], %s617
      %s619 = sshll.u32 [#allocation9], 4
      %s620 = int_to_ptr.vmem [resolvable:$true] %s619
      %625 = dma.vmem_to_hbm [thread:$0]  %s620, 2048, %s6, [#allocation5], 128, 128, 8
    $region53: #{tpu_custom_call.1} parent=1 // pred_fallthru
      _
    // Predicated region
    $region54: #{tpu_custom_call.1} parent=1 // pred_check
      _
    $region55: #{tpu_custom_call.1} parent=1 // pred_check_branch
      %627 = sbr.rel (0) target = $region57
    $region56: #{tpu_custom_call.1} parent=1 // pred_region
      %628 = dma.done [#allocation5], 2048
    $region57: #{tpu_custom_call.1} parent=1 // pred_fallthru
      _
    %629 = vsyncpa [#allocation4], 1
    %630 = vsyncpa [#allocation7], 1
    %631 = vsyncpa [#allocation5], 1

</llo_original>
